<compile_context>
chip_gen: v7x
topology: tpu7x:2x2x1
jax: 0.10.0
libtpu: 0.0.40
codegen_flags: <defaults>
</compile_context>

<pallas_src>
import jax
import jax.numpy as jnp
from jax.experimental import pallas as pl
from jax.experimental.pallas import tpu as pltpu

LANE = 128


def _round_up(n, m):
    return ((n + m - 1) // m) * m


def cae_kernel(x_ref,
               ew1_ref, eb1_ref,
               ew2_ref, eb2_ref,
               fzw_ref, fzb_ref,
               dw1_ref, db1_ref,
               dw2_ref, db2_ref,
               dw3_ref, db3_ref,
               xr_ref, z_ref):
    """Whole CAutoEncoder forward for one [tb, D] batch tile.

    bf16 MXU operands, f32 accumulation + elementwise math. The condition scalar is already
    folded into eb1/db1; fc_z / final-decoder weights are zero-padded to 128 output lanes so
    the padded z lanes are exactly 0 and both output stores are unmasked.
    """
    xb = x_ref[...]                                                      # [tb, D] bf16

    # ---- encoder: Linear(D+1 -> d1) + ReLU, Linear(d1 -> d2) + ReLU ----
    h1 = jnp.dot(xb, ew1_ref[...], preferred_element_type=jnp.float32) + eb1_ref[...]
    h1 = jnp.maximum(h1, 0.0)
    h2 = jnp.dot(h1.astype(jnp.bfloat16), ew2_ref[...],
                 preferred_element_type=jnp.float32) + eb2_ref[...]
    h2 = jnp.maximum(h2, 0.0)

    # ---- fc_z + L2 normalize (F.normalize, p=2, dim=1, eps=1e-12) ----
    z = jnp.dot(h2.astype(jnp.bfloat16), fzw_ref[...],
                preferred_element_type=jnp.float32) + fzb_ref[...]       # [tb, Zp], pad lanes = 0
    ss = jnp.sum(z * z, axis=1, keepdims=True)
    zn = z * jax.lax.rsqrt(jnp.maximum(ss, 1e-24))                       # clamp at eps^2

    # ---- decoder: Linear(Z+1 -> d2)+ReLU, Linear(d2 -> d1)+ReLU, Linear(d1 -> D) ----
    d1h = jnp.dot(zn.astype(jnp.bfloat16), dw1_ref[...],
                  preferred_element_type=jnp.float32) + db1_ref[...]
    d1h = jnp.maximum(d1h, 0.0)
    d2h = jnp.dot(d1h.astype(jnp.bfloat16), dw2_ref[...],
                  preferred_element_type=jnp.float32) + db2_ref[...]
    d2h = jnp.maximum(d2h, 0.0)
    xr = jnp.dot(d2h.astype(jnp.bfloat16), dw3_ref[...],
                 preferred_element_type=jnp.float32) + db3_ref[...]      # [tb, Dp]

    xr_ref[...] = xr                                                     # lane-dense f32 store
    z_ref[...] = zn                                                      # lane-dense f32 store


def cae_forward(x, c, params, *, tb=None):
    """Pallas wrapper. x: [B, D] f32, c: scalar f32. Returns (x_recon [B, D], z_norm [B, Z])."""
    B, D = x.shape
    Z = params["fzw"].shape[1]
    d1 = params["ew1x"].shape[1]
    d2 = params["ew2"].shape[1]
    Dp = _round_up(D, LANE)
    Zp = _round_up(Z, LANE)

    if tb is None:
        # Small batches: one grid step. Large batches: 1024-row tiles (still < 1 MiB VMEM each,
        # and the grid gives both v7x TensorCores work via dimension_semantics="parallel").
        tb = B if B <= 1024 else 1024
    assert B % tb == 0, "batch must be divisible by the batch tile"

    f32, bf16 = jnp.float32, jnp.bfloat16
    c = jnp.asarray(c, f32).reshape(())

    # Fold the scalar condition into the first-layer biases (one scalar*vector op, outside kernel).
    eb1 = (params["eb1"] + c * params["ew1c"]).astype(f32)               # [1, d1]
    db1 = (params["db1"] + c * params["dw1c"]).astype(f32)               # [1, d2]

    # Zero-pad output-facing weights to 128 lanes -> lane-dense unmasked stores in the kernel.
    fzw = jnp.zeros((d2, Zp), bf16).at[:, :Z].set(params["fzw"].astype(bf16))
    fzb = jnp.zeros((1, Zp), f32).at[:, :Z].set(params["fzb"].astype(f32))
    dw1 = jnp.zeros((Zp, d2), bf16).at[:Z, :].set(params["dw1z"].astype(bf16))
    dw3 = jnp.zeros((d1, Dp), bf16).at[:, :D].set(params["dw3"].astype(bf16))
    db3 = jnp.zeros((1, Dp), f32).at[:, :D].set(params["db3"].astype(f32))

    weights = [params["ew1x"].astype(bf16), eb1,
               params["ew2"].astype(bf16), params["eb2"].astype(f32),
               fzw, fzb,
               dw1, db1,
               params["dw2"].astype(bf16), params["db2"].astype(f32),
               dw3, db3]

    # Batch tiled over the grid; weights use replicated full-array blocks with a constant block
    # index, which Mosaic keeps resident in VMEM (no per-step re-DMA of the ~6 KiB of weights).
    in_specs = [pl.BlockSpec((tb, D), lambda i: (i, 0))]
    in_specs += [pl.BlockSpec(w.shape, lambda i: (0, 0)) for w in weights]

    out_specs = (pl.BlockSpec((tb, Dp), lambda i: (i, 0)),
                 pl.BlockSpec((tb, Zp), lambda i: (i, 0)))
    out_shape = (jax.ShapeDtypeStruct((B, Dp), f32),
                 jax.ShapeDtypeStruct((B, Zp), f32))

    xr_pad, zn_pad = pl.pallas_call(
        cae_kernel,
        grid=(B // tb,),
        in_specs=in_specs,
        out_specs=out_specs,
        out_shape=out_shape,
        compiler_params=pltpu.CompilerParams(dimension_semantics=("parallel",)),
    )(x.astype(bf16), *weights)

    return xr_pad[:, :D], zn_pad[:, :Z]


def init_params(key, dim_input, z_dim):
    """Deterministic kaiming-normal (fan_in, gain=sqrt(2)) weights, zero biases."""
    d0 = dim_input
    d1 = max(dim_input // 2, 4)
    d2 = max(dim_input // 3, 4)
    dims = [d0, d1, d2, z_dim]

    def kaiming(k, fan_in, fan_out):
        std = (2.0 / fan_in) ** 0.5
        return std * jax.random.normal(k, (fan_in, fan_out), jnp.float32)

    ks = jax.random.split(key, 6)
    # encoder layer 1 takes [x, c] -> split the (D+1, d1) weight into x-part and c-row
    enc_w1 = kaiming(ks[0], d0 + 1, d1)
    enc_w2 = kaiming(ks[1], d1, d2)
    fcz_w = kaiming(ks[2], d2, z_dim)
    # decoder layer 1 takes [z, c] -> split the (Z+1, d2) weight into z-part and c-row
    dec_w1 = kaiming(ks[3], z_dim + 1, d2)
    dec_w2 = kaiming(ks[4], d2, d1)
    dec_w3 = kaiming(ks[5], d1, d0)

    params = dict(
        ew1x=enc_w1[:d0, :], ew1c=enc_w1[d0:d0 + 1, :], eb1=jnp.zeros((1, d1), jnp.float32),
        ew2=enc_w2, eb2=jnp.zeros((1, d2), jnp.float32),
        fzw=fcz_w, fzb=jnp.zeros((1, z_dim), jnp.float32),
        dw1z=dec_w1[:z_dim, :], dw1c=dec_w1[z_dim:z_dim + 1, :], db1=jnp.zeros((1, d2), jnp.float32),
        dw2=dec_w2, db2=jnp.zeros((1, d1), jnp.float32),
        dw3=dec_w3, db3=jnp.zeros((1, d0), jnp.float32),
    )
    return params, dims


def cae_forward_ref(x, c, params):
    """Pure-JAX reference mirroring the PyTorch forward, with the same bf16-operand /
    f32-accumulation matmul precision as the kernel."""
    f32, bf16 = jnp.float32, jnp.bfloat16

    def mm(a, w):
        return jnp.dot(a.astype(bf16), w.astype(bf16), preferred_element_type=f32)

    c = jnp.asarray(c, f32).reshape(())
    h1 = jnp.maximum(mm(x, params["ew1x"]) + c * params["ew1c"] + params["eb1"], 0.0)
    h2 = jnp.maximum(mm(h1, params["ew2"]) + params["eb2"], 0.0)
    z = mm(h2, params["fzw"]) + params["fzb"]
    zn = z * jax.lax.rsqrt(jnp.maximum(jnp.sum(z * z, axis=1, keepdims=True), 1e-24))
    d1h = jnp.maximum(mm(zn, params["dw1z"]) + c * params["dw1c"] + params["db1"], 0.0)
    d2h = jnp.maximum(mm(d1h, params["dw2"]) + params["db2"], 0.0)
    xr = mm(d2h, params["dw3"]) + params["db3"]
    return xr, zn


if __name__ == "__main__":
    dim_input = 24      # -> dims [24, 12, 8, 32]
    z_dim = 32
    batch = 16

    key = jax.random.PRNGKey(0)
    kx, kc, kp = jax.random.split(key, 3)

    params, dims = init_params(kp, dim_input, z_dim)
    x = jax.random.normal(kx, (batch, dim_input), jnp.float32)
    c = jax.random.normal(kc, (), jnp.float32)   # scalar condition (matches c.view(-1,1).repeat(B,1))

    x_recon, z_norm = cae_forward(x, c, params)  # B=16 -> single grid step
    jax.block_until_ready((x_recon, z_norm))

    xr_ref, zn_ref = cae_forward_ref(x, c, params)
    assert x_recon.shape == (batch, dim_input) and z_norm.shape == (batch, z_dim)
    assert jnp.allclose(x_recon, xr_ref, atol=5e-3, rtol=5e-3)
    assert jnp.allclose(z_norm, zn_ref, atol=5e-3, rtol=5e-3)

    print("KERNEL_OK")
</pallas_src>

<mosaic_0001>
module attributes {stable_mosaic.version = 11 : i64} {
  func.func @cae_kernel(%arg0: i32, %arg1: memref<16x24xbf16, #tpu.memory_space<vmem>>, %arg2: memref<24x12xbf16, #tpu.memory_space<vmem>>, %arg3: memref<1x12xf32, #tpu.memory_space<vmem>>, %arg4: memref<12x8xbf16, #tpu.memory_space<vmem>>, %arg5: memref<1x8xf32, #tpu.memory_space<vmem>>, %arg6: memref<8x128xbf16, #tpu.memory_space<vmem>>, %arg7: memref<1x128xf32, #tpu.memory_space<vmem>>, %arg8: memref<128x8xbf16, #tpu.memory_space<vmem>>, %arg9: memref<1x8xf32, #tpu.memory_space<vmem>>, %arg10: memref<8x12xbf16, #tpu.memory_space<vmem>>, %arg11: memref<1x12xf32, #tpu.memory_space<vmem>>, %arg12: memref<12x128xbf16, #tpu.memory_space<vmem>>, %arg13: memref<1x128xf32, #tpu.memory_space<vmem>>, %arg14: memref<16x128xf32, #tpu.memory_space<vmem>>, %arg15: memref<16x128xf32, #tpu.memory_space<vmem>>) attributes {dimension_semantics = [#tpu.dimension_semantics<parallel>], iteration_bounds = array<i64: 1>, scalar_prefetch = 0 : i64, scratch_operands = 0 : i64, tpu.core_type = #tpu.core_type<tc>, window_params = [{transform_indices = @transform_0, window_bounds = array<i64: 16, 24>}, {pipeline_mode = #tpu.pipeline_mode<synchronous>, transform_indices = @transform_1, window_bounds = array<i64: 24, 12>}, {pipeline_mode = #tpu.pipeline_mode<synchronous>, transform_indices = @transform_2, window_bounds = array<i64: 1, 12>}, {pipeline_mode = #tpu.pipeline_mode<synchronous>, transform_indices = @transform_3, window_bounds = array<i64: 12, 8>}, {pipeline_mode = #tpu.pipeline_mode<synchronous>, transform_indices = @transform_4, window_bounds = array<i64: 1, 8>}, {pipeline_mode = #tpu.pipeline_mode<synchronous>, transform_indices = @transform_5, window_bounds = array<i64: 8, 128>}, {pipeline_mode = #tpu.pipeline_mode<synchronous>, transform_indices = @transform_6, window_bounds = array<i64: 1, 128>}, {pipeline_mode = #tpu.pipeline_mode<synchronous>, transform_indices = @transform_7, window_bounds = array<i64: 128, 8>}, {pipeline_mode = #tpu.pipeline_mode<synchronous>, transform_indices = @transform_8, window_bounds = array<i64: 1, 8>}, {pipeline_mode = #tpu.pipeline_mode<synchronous>, transform_indices = @transform_9, window_bounds = array<i64: 8, 12>}, {pipeline_mode = #tpu.pipeline_mode<synchronous>, transform_indices = @transform_10, window_bounds = array<i64: 1, 12>}, {pipeline_mode = #tpu.pipeline_mode<synchronous>, transform_indices = @transform_11, window_bounds = array<i64: 12, 128>}, {pipeline_mode = #tpu.pipeline_mode<synchronous>, transform_indices = @transform_12, window_bounds = array<i64: 1, 128>}, {transform_indices = @transform_13, window_bounds = array<i64: 16, 128>}, {transform_indices = @transform_14, window_bounds = array<i64: 16, 128>}]} {
    %c0 = arith.constant 0 : index
    %c0_0 = arith.constant 0 : index
    %0 = vector.load %arg1[%c0, %c0_0] : memref<16x24xbf16, #tpu.memory_space<vmem>>, vector<16x24xbf16>
    %c0_1 = arith.constant 0 : index
    %c0_2 = arith.constant 0 : index
    %1 = vector.load %arg2[%c0_1, %c0_2] : memref<24x12xbf16, #tpu.memory_space<vmem>>, vector<24x12xbf16>
    %cst = arith.constant dense<0.000000e+00> : vector<16x12xf32>
    %2 = tpu.matmul %0, %1, %cst {dimension_numbers = #tpu.dot_dimension_numbers<[1], [0], [0], [1], [0, 0, 1, 1], [], []>} : vector<16x24xbf16>, vector<24x12xbf16>, vector<16x12xf32> -> vector<16x12xf32>
    %c0_3 = arith.constant 0 : index
    %c0_4 = arith.constant 0 : index
    %3 = vector.load %arg3[%c0_3, %c0_4] : memref<1x12xf32, #tpu.memory_space<vmem>>, vector<1x12xf32>
    %4 = vector.broadcast %3 : vector<1x12xf32> to vector<16x12xf32>
    %5 = arith.addf %2, %4 : vector<16x12xf32>
    %cst_5 = arith.constant 0.000000e+00 : f32
    %6 = vector.broadcast %cst_5 : f32 to vector<16x12xf32>
    %7 = arith.maximumf %5, %6 : vector<16x12xf32>
    %8 = arith.truncf %7 : vector<16x12xf32> to vector<16x12xbf16>
    %c0_6 = arith.constant 0 : index
    %c0_7 = arith.constant 0 : index
    %9 = vector.load %arg4[%c0_6, %c0_7] : memref<12x8xbf16, #tpu.memory_space<vmem>>, vector<12x8xbf16>
    %cst_8 = arith.constant dense<0.000000e+00> : vector<16x8xf32>
    %10 = tpu.matmul %8, %9, %cst_8 {dimension_numbers = #tpu.dot_dimension_numbers<[1], [0], [0], [1], [0, 0, 1, 1], [], []>} : vector<16x12xbf16>, vector<12x8xbf16>, vector<16x8xf32> -> vector<16x8xf32>
    %c0_9 = arith.constant 0 : index
    %c0_10 = arith.constant 0 : index
    %11 = vector.load %arg5[%c0_9, %c0_10] : memref<1x8xf32, #tpu.memory_space<vmem>>, vector<1x8xf32>
    %12 = vector.broadcast %11 : vector<1x8xf32> to vector<16x8xf32>
    %13 = arith.addf %10, %12 : vector<16x8xf32>
    %cst_11 = arith.constant 0.000000e+00 : f32
    %14 = vector.broadcast %cst_11 : f32 to vector<16x8xf32>
    %15 = arith.maximumf %13, %14 : vector<16x8xf32>
    %16 = arith.truncf %15 : vector<16x8xf32> to vector<16x8xbf16>
    %c0_12 = arith.constant 0 : index
    %c0_13 = arith.constant 0 : index
    %17 = vector.load %arg6[%c0_12, %c0_13] : memref<8x128xbf16, #tpu.memory_space<vmem>>, vector<8x128xbf16>
    %cst_14 = arith.constant dense<0.000000e+00> : vector<16x128xf32>
    %18 = tpu.matmul %16, %17, %cst_14 {dimension_numbers = #tpu.dot_dimension_numbers<[1], [0], [0], [1], [0, 0, 1, 1], [], []>} : vector<16x8xbf16>, vector<8x128xbf16>, vector<16x128xf32> -> vector<16x128xf32>
    %c0_15 = arith.constant 0 : index
    %c0_16 = arith.constant 0 : index
    %19 = vector.load %arg7[%c0_15, %c0_16] : memref<1x128xf32, #tpu.memory_space<vmem>>, vector<1x128xf32>
    %20 = vector.broadcast %19 : vector<1x128xf32> to vector<16x128xf32>
    %21 = arith.addf %18, %20 : vector<16x128xf32>
    %22 = arith.mulf %21, %21 : vector<16x128xf32>
    %cst_17 = arith.constant dense<0.000000e+00> : vector<16xf32>
    %23 = vector.multi_reduction <add>, %22, %cst_17 [1] : vector<16x128xf32> to vector<16xf32>
    %24 = vector.shape_cast %23 : vector<16xf32> to vector<16x1xf32>
    %cst_18 = arith.constant 1.000000e-24 : f32
    %25 = vector.broadcast %cst_18 : f32 to vector<16x1xf32>
    %26 = arith.maximumf %24, %25 : vector<16x1xf32>
    %27 = math.rsqrt %26 : vector<16x1xf32>
    %28 = vector.broadcast %27 : vector<16x1xf32> to vector<16x128xf32>
    %29 = arith.mulf %21, %28 : vector<16x128xf32>
    %30 = arith.truncf %29 : vector<16x128xf32> to vector<16x128xbf16>
    %c0_19 = arith.constant 0 : index
    %c0_20 = arith.constant 0 : index
    %31 = vector.load %arg8[%c0_19, %c0_20] : memref<128x8xbf16, #tpu.memory_space<vmem>>, vector<128x8xbf16>
    %cst_21 = arith.constant dense<0.000000e+00> : vector<16x8xf32>
    %32 = tpu.matmul %30, %31, %cst_21 {dimension_numbers = #tpu.dot_dimension_numbers<[1], [0], [0], [1], [0, 0, 1, 1], [], []>} : vector<16x128xbf16>, vector<128x8xbf16>, vector<16x8xf32> -> vector<16x8xf32>
    %c0_22 = arith.constant 0 : index
    %c0_23 = arith.constant 0 : index
    %33 = vector.load %arg9[%c0_22, %c0_23] : memref<1x8xf32, #tpu.memory_space<vmem>>, vector<1x8xf32>
    %34 = vector.broadcast %33 : vector<1x8xf32> to vector<16x8xf32>
    %35 = arith.addf %32, %34 : vector<16x8xf32>
    %cst_24 = arith.constant 0.000000e+00 : f32
    %36 = vector.broadcast %cst_24 : f32 to vector<16x8xf32>
    %37 = arith.maximumf %35, %36 : vector<16x8xf32>
    %38 = arith.truncf %37 : vector<16x8xf32> to vector<16x8xbf16>
    %c0_25 = arith.constant 0 : index
    %c0_26 = arith.constant 0 : index
    %39 = vector.load %arg10[%c0_25, %c0_26] : memref<8x12xbf16, #tpu.memory_space<vmem>>, vector<8x12xbf16>
    %cst_27 = arith.constant dense<0.000000e+00> : vector<16x12xf32>
    %40 = tpu.matmul %38, %39, %cst_27 {dimension_numbers = #tpu.dot_dimension_numbers<[1], [0], [0], [1], [0, 0, 1, 1], [], []>} : vector<16x8xbf16>, vector<8x12xbf16>, vector<16x12xf32> -> vector<16x12xf32>
    %c0_28 = arith.constant 0 : index
    %c0_29 = arith.constant 0 : index
    %41 = vector.load %arg11[%c0_28, %c0_29] : memref<1x12xf32, #tpu.memory_space<vmem>>, vector<1x12xf32>
    %42 = vector.broadcast %41 : vector<1x12xf32> to vector<16x12xf32>
    %43 = arith.addf %40, %42 : vector<16x12xf32>
    %cst_30 = arith.constant 0.000000e+00 : f32
    %44 = vector.broadcast %cst_30 : f32 to vector<16x12xf32>
    %45 = arith.maximumf %43, %44 : vector<16x12xf32>
    %46 = arith.truncf %45 : vector<16x12xf32> to vector<16x12xbf16>
    %c0_31 = arith.constant 0 : index
    %c0_32 = arith.constant 0 : index
    %47 = vector.load %arg12[%c0_31, %c0_32] : memref<12x128xbf16, #tpu.memory_space<vmem>>, vector<12x128xbf16>
    %cst_33 = arith.constant dense<0.000000e+00> : vector<16x128xf32>
    %48 = tpu.matmul %46, %47, %cst_33 {dimension_numbers = #tpu.dot_dimension_numbers<[1], [0], [0], [1], [0, 0, 1, 1], [], []>} : vector<16x12xbf16>, vector<12x128xbf16>, vector<16x128xf32> -> vector<16x128xf32>
    %c0_34 = arith.constant 0 : index
    %c0_35 = arith.constant 0 : index
    %49 = vector.load %arg13[%c0_34, %c0_35] : memref<1x128xf32, #tpu.memory_space<vmem>>, vector<1x128xf32>
    %50 = vector.broadcast %49 : vector<1x128xf32> to vector<16x128xf32>
    %51 = arith.addf %48, %50 : vector<16x128xf32>
    %c0_36 = arith.constant 0 : index
    %c0_37 = arith.constant 0 : index
    %52 = vector.load %arg14[%c0_36, %c0_37] : memref<16x128xf32, #tpu.memory_space<vmem>>, vector<16x128xf32>
    tpu.vector_store %arg14[%c0_36, %c0_37], %51 {strides = array<i32>} : memref<16x128xf32, #tpu.memory_space<vmem>>, vector<16x128xf32>,
    %c0_38 = arith.constant 0 : index
    %c0_39 = arith.constant 0 : index
    %53 = vector.load %arg15[%c0_38, %c0_39] : memref<16x128xf32, #tpu.memory_space<vmem>>, vector<16x128xf32>
    tpu.vector_store %arg15[%c0_38, %c0_39], %29 {strides = array<i32>} : memref<16x128xf32, #tpu.memory_space<vmem>>, vector<16x128xf32>,
    return
  }
  func.func @transform_0(%arg0: i32) -> (i32, i32) {
    %c0_i32 = arith.constant 0 : i32
    %c0_i32_0 = arith.constant 0 : i32
    return %arg0, %c0_i32 : i32, i32
  }
  func.func @transform_1(%arg0: i32) -> (i32, i32) {
    %c0_i32 = arith.constant 0 : i32
    %c0_i32_0 = arith.constant 0 : i32
    %c0_i32_1 = arith.constant 0 : i32
    return %c0_i32, %c0_i32_0 : i32, i32
  }
  func.func @transform_2(%arg0: i32) -> (i32, i32) {
    %c0_i32 = arith.constant 0 : i32
    %c0_i32_0 = arith.constant 0 : i32
    %c0_i32_1 = arith.constant 0 : i32
    return %c0_i32, %c0_i32_0 : i32, i32
  }
  func.func @transform_3(%arg0: i32) -> (i32, i32) {
    %c0_i32 = arith.constant 0 : i32
    %c0_i32_0 = arith.constant 0 : i32
    %c0_i32_1 = arith.constant 0 : i32
    return %c0_i32, %c0_i32_0 : i32, i32
  }
  func.func @transform_4(%arg0: i32) -> (i32, i32) {
    %c0_i32 = arith.constant 0 : i32
    %c0_i32_0 = arith.constant 0 : i32
    %c0_i32_1 = arith.constant 0 : i32
    return %c0_i32, %c0_i32_0 : i32, i32
  }
  func.func @transform_5(%arg0: i32) -> (i32, i32) {
    %c0_i32 = arith.constant 0 : i32
    %c0_i32_0 = arith.constant 0 : i32
    %c0_i32_1 = arith.constant 0 : i32
    return %c0_i32, %c0_i32_0 : i32, i32
  }
  func.func @transform_6(%arg0: i32) -> (i32, i32) {
    %c0_i32 = arith.constant 0 : i32
    %c0_i32_0 = arith.constant 0 : i32
    %c0_i32_1 = arith.constant 0 : i32
    return %c0_i32, %c0_i32_0 : i32, i32
  }
  func.func @transform_7(%arg0: i32) -> (i32, i32) {
    %c0_i32 = arith.constant 0 : i32
    %c0_i32_0 = arith.constant 0 : i32
    %c0_i32_1 = arith.constant 0 : i32
    return %c0_i32, %c0_i32_0 : i32, i32
  }
  func.func @transform_8(%arg0: i32) -> (i32, i32) {
    %c0_i32 = arith.constant 0 : i32
    %c0_i32_0 = arith.constant 0 : i32
    %c0_i32_1 = arith.constant 0 : i32
    return %c0_i32, %c0_i32_0 : i32, i32
  }
  func.func @transform_9(%arg0: i32) -> (i32, i32) {
    %c0_i32 = arith.constant 0 : i32
    %c0_i32_0 = arith.constant 0 : i32
    %c0_i32_1 = arith.constant 0 : i32
    return %c0_i32, %c0_i32_0 : i32, i32
  }
  func.func @transform_10(%arg0: i32) -> (i32, i32) {
    %c0_i32 = arith.constant 0 : i32
    %c0_i32_0 = arith.constant 0 : i32
    %c0_i32_1 = arith.constant 0 : i32
    return %c0_i32, %c0_i32_0 : i32, i32
  }
  func.func @transform_11(%arg0: i32) -> (i32, i32) {
    %c0_i32 = arith.constant 0 : i32
    %c0_i32_0 = arith.constant 0 : i32
    %c0_i32_1 = arith.constant 0 : i32
    return %c0_i32, %c0_i32_0 : i32, i32
  }
  func.func @transform_12(%arg0: i32) -> (i32, i32) {
    %c0_i32 = arith.constant 0 : i32
    %c0_i32_0 = arith.constant 0 : i32
    %c0_i32_1 = arith.constant 0 : i32
    return %c0_i32, %c0_i32_0 : i32, i32
  }
  func.func @transform_13(%arg0: i32) -> (i32, i32) {
    %c0_i32 = arith.constant 0 : i32
    %c0_i32_0 = arith.constant 0 : i32
    return %arg0, %c0_i32 : i32, i32
  }
  func.func @transform_14(%arg0: i32) -> (i32, i32) {
    %c0_i32 = arith.constant 0 : i32
    %c0_i32_0 = arith.constant 0 : i32
    return %arg0, %c0_i32 : i32, i32
  }
}

</mosaic_0001>

<llo_original>
// kernel: tpu_custom_call.1
$region0: #{tpu_custom_call.1}
  #allocation0 [shape = 'u32[]', space=smem, size = 0x4, offset = 0x4, fixed_abs, tag = 'smem constant byte address 0x4 - core index']
  #allocation1 [shape = 'u32[144,128]{1,0:T(1,128)}', space=vmem, size = 0x12000, scoped, tag = 'internal scratch']
  %s0 = inlined_call_operand.vmem [shape: bf16[16,24], index: 0, kind: input, shape index: {}]
  %s1 = inlined_call_operand.vmem [shape: bf16[24,12], index: 1, kind: input, shape index: {}]
  %s2 = inlined_call_operand.vmem [shape: f32[1,12], index: 2, kind: input, shape index: {}]
  %s3 = inlined_call_operand.vmem [shape: bf16[12,8], index: 3, kind: input, shape index: {}]
  %s4 = inlined_call_operand.vmem [shape: f32[1,8], index: 4, kind: input, shape index: {}]
  %s5 = inlined_call_operand.vmem [shape: bf16[8,128], index: 5, kind: input, shape index: {}]
  %s6 = inlined_call_operand.vmem [shape: f32[1,128], index: 6, kind: input, shape index: {}]
  %s7 = inlined_call_operand.vmem [shape: bf16[128,8], index: 7, kind: input, shape index: {}]
  %s8 = inlined_call_operand.vmem [shape: f32[1,8], index: 8, kind: input, shape index: {}]
  %s9 = inlined_call_operand.vmem [shape: bf16[8,12], index: 9, kind: input, shape index: {}]
  %s10 = inlined_call_operand.vmem [shape: f32[1,12], index: 10, kind: input, shape index: {}]
  %s11 = inlined_call_operand.vmem [shape: bf16[12,128], index: 11, kind: input, shape index: {}]
  %s12 = inlined_call_operand.vmem [shape: f32[1,128], index: 12, kind: input, shape index: {}]
  %s13 = inlined_call_operand.hbm [shape: f32[16,128], index: 13, kind: output, shape index: {0}]
  %s14 = inlined_call_operand.hbm [shape: f32[16,128], index: 14, kind: output, shape index: {1}]
  %15 = xla_tuple %s13, %s14
  %s16 = sld [smem:[#allocation0]]
  $region70: #{tpu_custom_call.1} parent=0
    _
  %s18 = ssub.s32 1, %s16
  %s19 = scalar_select 0, %s18, %s16
  $region1: #{tpu_custom_call.1} parent=0
    #allocation2 [shape = 'u8[8192]{0}', space=vmem, size = 0x2000, scoped, tag = 'output window, operand 0, single buffered']
    #allocation3 [shape = 's32[1]{0}', space=sflag, size = 0x4, scoped, tag = 'scoped memory for tpu_custom_call.1']
    #allocation4 [shape = 'u8[8192]{0}', space=vmem, size = 0x2000, scoped, tag = 'output window, operand 1, single buffered']
    #allocation5 [shape = 's32[1]{0}', space=sflag, size = 0x4, scoped, tag = 'scoped memory for tpu_custom_call.1']
    %20 = vsyncpa [#allocation3], 0
    %21 = vsyncpa [#allocation5], 0
    // Predicated region
    $region2: #{tpu_custom_call.1} parent=1 // pred_check
      _
    $region3: #{tpu_custom_call.1} parent=1 // pred_check_branch
      %23 = sbr.rel (0) target = $region5
    $region4: #{tpu_custom_call.1} parent=1 // pred_region
      _
    $region5: #{tpu_custom_call.1} parent=1 // pred_fallthru
      _
    // Predicated region
    $region6: #{tpu_custom_call.1} parent=1 // pred_check
      _
    $region7: #{tpu_custom_call.1} parent=1 // pred_check_branch
      %25 = sbr.rel (0) target = $region9
    $region8: #{tpu_custom_call.1} parent=1 // pred_region
      _
    $region9: #{tpu_custom_call.1} parent=1 // pred_fallthru
      _
    // Predicated region
    $region10: #{tpu_custom_call.1} parent=1 // pred_check
      _
    $region11: #{tpu_custom_call.1} parent=1 // pred_check_branch
      %27 = sbr.rel (0) target = $region13
    $region12: #{tpu_custom_call.1} parent=1 // pred_region
      _
    $region13: #{tpu_custom_call.1} parent=1 // pred_fallthru
      _
    // Predicated region
    $region14: #{tpu_custom_call.1} parent=1 // pred_check
      _
    $region15: #{tpu_custom_call.1} parent=1 // pred_check_branch
      %29 = sbr.rel (0) target = $region17
    $region16: #{tpu_custom_call.1} parent=1 // pred_region
      _
    $region17: #{tpu_custom_call.1} parent=1 // pred_fallthru
      _
    // Predicated region
    $region18: #{tpu_custom_call.1} parent=1 // pred_check
      _
    $region19: #{tpu_custom_call.1} parent=1 // pred_check_branch
      %31 = sbr.rel (0) target = $region21
    $region20: #{tpu_custom_call.1} parent=1 // pred_region
      _
    $region21: #{tpu_custom_call.1} parent=1 // pred_fallthru
      _
    // Predicated region
    $region22: #{tpu_custom_call.1} parent=1 // pred_check
      _
    $region23: #{tpu_custom_call.1} parent=1 // pred_check_branch
      %33 = sbr.rel (0) target = $region25
    $region24: #{tpu_custom_call.1} parent=1 // pred_region
      _
    $region25: #{tpu_custom_call.1} parent=1 // pred_fallthru
      _
    // Predicated region
    $region26: #{tpu_custom_call.1} parent=1 // pred_check
      _
    $region27: #{tpu_custom_call.1} parent=1 // pred_check_branch
      %35 = sbr.rel (0) target = $region29
    $region28: #{tpu_custom_call.1} parent=1 // pred_region
      _
    $region29: #{tpu_custom_call.1} parent=1 // pred_fallthru
      _
    // Predicated region
    $region30: #{tpu_custom_call.1} parent=1 // pred_check
      _
    $region31: #{tpu_custom_call.1} parent=1 // pred_check_branch
      %37 = sbr.rel (0) target = $region33
    $region32: #{tpu_custom_call.1} parent=1 // pred_region
      _
    $region33: #{tpu_custom_call.1} parent=1 // pred_fallthru
      _
    // Predicated region
    $region34: #{tpu_custom_call.1} parent=1 // pred_check
      _
    $region35: #{tpu_custom_call.1} parent=1 // pred_check_branch
      %39 = sbr.rel (0) target = $region37
    $region36: #{tpu_custom_call.1} parent=1 // pred_region
      _
    $region37: #{tpu_custom_call.1} parent=1 // pred_fallthru
      _
    // Predicated region
    $region38: #{tpu_custom_call.1} parent=1 // pred_check
      _
    $region39: #{tpu_custom_call.1} parent=1 // pred_check_branch
      %41 = sbr.rel (0) target = $region41
    $region40: #{tpu_custom_call.1} parent=1 // pred_region
      _
    $region41: #{tpu_custom_call.1} parent=1 // pred_fallthru
      _
    // Predicated region
    $region42: #{tpu_custom_call.1} parent=1 // pred_check
      _
    $region43: #{tpu_custom_call.1} parent=1 // pred_check_branch
      %43 = sbr.rel (0) target = $region45
    $region44: #{tpu_custom_call.1} parent=1 // pred_region
      _
    $region45: #{tpu_custom_call.1} parent=1 // pred_fallthru
      _
    // Predicated region
    $region46: #{tpu_custom_call.1} parent=1 // pred_check
      _
    $region47: #{tpu_custom_call.1} parent=1 // pred_check_branch
      %45 = sbr.rel (0) target = $region49
    $region48: #{tpu_custom_call.1} parent=1 // pred_region
      _
    $region49: #{tpu_custom_call.1} parent=1 // pred_fallthru
      _
    // Predicated region
    $region50: #{tpu_custom_call.1} parent=1 // pred_check
      _
    $region51: #{tpu_custom_call.1} parent=1 // pred_check_branch
      %47 = sbr.rel (0) target = $region53
    $region52: #{tpu_custom_call.1} parent=1 // pred_region
      _
    $region53: #{tpu_custom_call.1} parent=1 // pred_fallthru
      _
    %v49 = vld [vmem:[%s0] sm:$0xf]
    %v50 = vld [vmem:[%s0 + $0x4] sm:$0xf]
    %v51 = vld [vmem:[%s1] sm:$0xf]
    %v52 = vld [vmem:[%s1 + $0x4] sm:$0xf]
    %v53 = vld [vmem:[%s1 + $0x8] sm:$0xf]
    %v54 = vld [vmem:[%s2] sm:$0x1]
    %v56 = vlaneseq
    %v57 = vshrl.u32 %v56, 7
    %v58 = vsub.s32 0, %v57
    %v59 = vrot.slane %v54, %v58
    %v63 = vunpack.c.l.b16 %v49
    %v64 = vunpack.c.l.b16 %v50
    %v65 = vpack.c.b16 %v64, %v63
    %v69 = vunpack.c.l.b16 %v51
    %v70 = vunpack.c.l.b16 %v52
    %v71 = vunpack.c.l.b16 %v53
    %v72 = vpack.c.b16 %v70, %v69
    %v73 = vpack.c.b16 %v71, %v71
    %vm75 = vcmask 195584
    %v77 = vsel %vm75, %v65, 0
    %vm79 = vcmask 1043456
    %v81 = vsel %vm79, %v73, 0
    %83 = vmatprep.subr.bf16.mxu0 0
    %84 = vmatpush1.bf16.msra.mxu0 %v72
    %85 = vmatprep.subr.bf16.mxu0 0
    %86 = vmatpush1.bf16.msra.mxu0 %v81
    %87 = vmatprep.subr.bf16.mxu0 0
    %88 = vmatpush1.bf16.msra.mxu0 0
    %89 = vmatprep.subr.bf16.mxu0 0
    %90 = vmatpush1.bf16.msra.mxu0 0
    %91 = vmatprep.subr.bf16.mxu0 0
    %92 = vmatpush1.bf16.msra.mxu0 0
    %93 = vmatprep.subr.bf16.mxu0 0
    %94 = vmatpush1.bf16.msra.mxu0 0
    %95 = vmatprep.subr.bf16.mxu0 0
    %96 = vmatpush1.bf16.msra.mxu0 0
    %97 = vmatprep.subr.bf16.mxu0 0
    %98 = vmatpush1.bf16.msra.mxu0 0
    %99 = vmatprep.subr.bf16.mxu0 0
    %100 = vmatpush1.bf16.msra.mxu0 0
    %101 = vmatprep.subr.bf16.mxu0 0
    %102 = vmatpush1.bf16.msra.mxu0 0
    %103 = vmatprep.subr.bf16.mxu0 0
    %104 = vmatpush1.bf16.msra.mxu0 0
    %105 = vmatprep.subr.bf16.mxu0 0
    %106 = vmatpush1.bf16.msra.mxu0 0
    %107 = vmatprep.subr.bf16.mxu0 0
    %108 = vmatpush1.bf16.msra.mxu0 0
    %109 = vmatprep.subr.bf16.mxu0 0
    %110 = vmatpush1.bf16.msra.mxu0 0
    %111 = vmatprep.subr.bf16.mxu0 0
    %112 = vmatpush1.bf16.msra.mxu0 0
    %113 = vmatprep.subr.bf16.mxu0 0
    %114 = vmatpush1.bf16.msra.mxu0 0
    %115 = vmatprep.mubr.bf16.mxu0 0
    %116 = vmatmul.mubr.bf16.gmra.mrb[0].mxu0 %v77
    %v117 = vpop.f32.mrb[0].mxu0
    %v118 = vadd.f32 %v59, %v117
    %v119 = vpop.f32.mrb[0].mxu0
    %v120 = vpop.f32.mrb[0].mxu0
    %v121 = vadd.f32 %v59, %v120
    %v122 = vpop.f32.mrb[0].mxu0
    %123 = vdwg.mxu0
    %v124 = vmax.f32 %v118, 0.0
    %v125 = vmax.f32 %v121, 0.0
    %v126 = vpack.c.bf16 %v125, %v124
    %v127 = vld [vmem:[%s3] sm:$0xf]
    %v128 = vld [vmem:[%s3 + $0x4] sm:$0x3]
    %v129 = vld [vmem:[%s4] sm:$0x1]
    %v131 = vlaneseq
    %v132 = vshrl.u32 %v131, 7
    %v133 = vsub.s32 0, %v132
    %v134 = vrot.slane %v129, %v133
    %v138 = vunpack.c.l.b16 %v127
    %v139 = vunpack.c.l.b16 %v128
    %v140 = vpack.c.b16 %v139, %v138
    %vm141 = vcmask 97280
    %v143 = vsel %vm141, %v126, 0
    %vm145 = vcmask 1045504
    %v147 = vsel %vm145, %v140, 0
    %149 = vmatprep.subr.bf16.mxu0 0
    %150 = vmatpush1.bf16.msra.mxu0 %v147
    %151 = vmatprep.subr.bf16.mxu0 0
    %152 = vmatpush1.bf16.msra.mxu0 0
    %153 = vmatprep.subr.bf16.mxu0 0
    %154 = vmatpush1.bf16.msra.mxu0 0
    %155 = vmatprep.subr.bf16.mxu0 0
    %156 = vmatpush1.bf16.msra.mxu0 0
    %157 = vmatprep.subr.bf16.mxu0 0
    %158 = vmatpush1.bf16.msra.mxu0 0
    %159 = vmatprep.subr.bf16.mxu0 0
    %160 = vmatpush1.bf16.msra.mxu0 0
    %161 = vmatprep.subr.bf16.mxu0 0
    %162 = vmatpush1.bf16.msra.mxu0 0
    %163 = vmatprep.subr.bf16.mxu0 0
    %164 = vmatpush1.bf16.msra.mxu0 0
    %165 = vmatprep.subr.bf16.mxu0 0
    %166 = vmatpush1.bf16.msra.mxu0 0
    %167 = vmatprep.subr.bf16.mxu0 0
    %168 = vmatpush1.bf16.msra.mxu0 0
    %169 = vmatprep.subr.bf16.mxu0 0
    %170 = vmatpush1.bf16.msra.mxu0 0
    %171 = vmatprep.subr.bf16.mxu0 0
    %172 = vmatpush1.bf16.msra.mxu0 0
    %173 = vmatprep.subr.bf16.mxu0 0
    %174 = vmatpush1.bf16.msra.mxu0 0
    %175 = vmatprep.subr.bf16.mxu0 0
    %176 = vmatpush1.bf16.msra.mxu0 0
    %177 = vmatprep.subr.bf16.mxu0 0
    %178 = vmatpush1.bf16.msra.mxu0 0
    %179 = vmatprep.subr.bf16.mxu0 0
    %180 = vmatpush1.bf16.msra.mxu0 0
    %181 = vmatprep.mubr.bf16.mxu0 0
    %182 = vmatmul.mubr.bf16.gmra.mrb[0].mxu0 %v143
    %v183 = vpop.f32.mrb[0].mxu0
    %v184 = vadd.f32 %v134, %v183
    %v185 = vpop.f32.mrb[0].mxu0
    %v186 = vpop.f32.mrb[0].mxu0
    %v187 = vadd.f32 %v134, %v186
    %v188 = vpop.f32.mrb[0].mxu0
    %189 = vdwg.mxu0
    %v190 = vmax.f32 %v184, 0.0
    %v191 = vmax.f32 %v187, 0.0
    %v192 = vpack.c.bf16 %v191, %v190
    %v193 = vld [vmem:[%s5] sm:$0xf]
    %v194 = vld [vmem:[%s6] sm:$0x1]
    %v196 = vlaneseq
    %v197 = vshrl.u32 %v196, 7
    %v198 = vsub.s32 0, %v197
    %v199 = vrot.slane %v194, %v198
    %vm201 = vcmask 64512
    %v203 = vsel %vm201, %v192, 0
    %v206 = vsel %vm79, %v193, 0
    %208 = vmatprep.subr.bf16.mxu0 0
    %209 = vmatpush1.bf16.msra.mxu0 %v206
    %210 = vmatprep.subr.bf16.mxu0 0
    %211 = vmatpush1.bf16.msra.mxu0 0
    %212 = vmatprep.subr.bf16.mxu0 0
    %213 = vmatpush1.bf16.msra.mxu0 0
    %214 = vmatprep.subr.bf16.mxu0 0
    %215 = vmatpush1.bf16.msra.mxu0 0
    %216 = vmatprep.subr.bf16.mxu0 0
    %217 = vmatpush1.bf16.msra.mxu0 0
    %218 = vmatprep.subr.bf16.mxu0 0
    %219 = vmatpush1.bf16.msra.mxu0 0
    %220 = vmatprep.subr.bf16.mxu0 0
    %221 = vmatpush1.bf16.msra.mxu0 0
    %222 = vmatprep.subr.bf16.mxu0 0
    %223 = vmatpush1.bf16.msra.mxu0 0
    %224 = vmatprep.subr.bf16.mxu0 0
    %225 = vmatpush1.bf16.msra.mxu0 0
    %226 = vmatprep.subr.bf16.mxu0 0
    %227 = vmatpush1.bf16.msra.mxu0 0
    %228 = vmatprep.subr.bf16.mxu0 0
    %229 = vmatpush1.bf16.msra.mxu0 0
    %230 = vmatprep.subr.bf16.mxu0 0
    %231 = vmatpush1.bf16.msra.mxu0 0
    %232 = vmatprep.subr.bf16.mxu0 0
    %233 = vmatpush1.bf16.msra.mxu0 0
    %234 = vmatprep.subr.bf16.mxu0 0
    %235 = vmatpush1.bf16.msra.mxu0 0
    %236 = vmatprep.subr.bf16.mxu0 0
    %237 = vmatpush1.bf16.msra.mxu0 0
    %238 = vmatprep.subr.bf16.mxu0 0
    %239 = vmatpush1.bf16.msra.mxu0 0
    %240 = vmatprep.mubr.bf16.mxu0 0
    %241 = vmatmul.mubr.bf16.gmra.mrb[0].mxu0 %v203
    %v242 = vpop.f32.mrb[0].mxu0
    %v243 = vadd.f32 %v199, %v242
    %v244 = vpop.f32.mrb[0].mxu0
    %v245 = vpop.f32.mrb[0].mxu0
    %v246 = vadd.f32 %v199, %v245
    %v247 = vpop.f32.mrb[0].mxu0
    %248 = vdwg.mxu0
    %v249 = vmul.f32 %v243, %v243
    %v250 = vmul.f32 %v246, %v246
    %251 = vadd.xlane.f32.xlu0 %v249
    %v252 = vpop.xlane.xlu0 %251
    %253 = vadd.xlane.f32.xlu0 %v250
    %v254 = vpop.xlane.xlu0 %253
    %v255 = vmax.f32 %v252, 1e-24
    %v256 = vmax.f32 %v254, 1e-24
    %v257 = vrsqrt.pop %v255
    %v258 = vrsqrt.pop %v256
    %v259 = vmul.f32 %v243, %v257
    %v260 = vmul.f32 %v246, %v258
    %v261 = vpack.c.bf16 %v260, %v259
    %v262 = vld [vmem:[%s7] sm:$0xf]
    %v263 = vld [vmem:[%s7 + $0x4] sm:$0xf]
    %v264 = vld [vmem:[%s7 + $0x8] sm:$0xf]
    %v265 = vld [vmem:[%s7 + $0xc] sm:$0xf]
    %v266 = vld [vmem:[%s7 + $0x10] sm:$0xf]
    %v267 = vld [vmem:[%s7 + $0x14] sm:$0xf]
    %v268 = vld [vmem:[%s7 + $0x18] sm:$0xf]
    %v269 = vld [vmem:[%s7 + $0x1c] sm:$0xf]
    %v270 = vld [vmem:[%s7 + $0x20] sm:$0xf]
    %v271 = vld [vmem:[%s7 + $0x24] sm:$0xf]
    %v272 = vld [vmem:[%s7 + $0x28] sm:$0xf]
    %v273 = vld [vmem:[%s7 + $0x2c] sm:$0xf]
    %v274 = vld [vmem:[%s7 + $0x30] sm:$0xf]
    %v275 = vld [vmem:[%s7 + $0x34] sm:$0xf]
    %v276 = vld [vmem:[%s7 + $0x38] sm:$0xf]
    %v277 = vld [vmem:[%s7 + $0x3c] sm:$0xf]
    %v278 = vld [vmem:[%s8] sm:$0x1]
    %v280 = vlaneseq
    %v281 = vshrl.u32 %v280, 7
    %v282 = vsub.s32 0, %v281
    %v283 = vrot.slane %v278, %v282
    %v301 = vunpack.c.l.b16 %v262
    %v302 = vunpack.c.l.b16 %v263
    %v303 = vunpack.c.l.b16 %v264
    %v304 = vunpack.c.l.b16 %v265
    %v305 = vunpack.c.l.b16 %v266
    %v306 = vunpack.c.l.b16 %v267
    %v307 = vunpack.c.l.b16 %v268
    %v308 = vunpack.c.l.b16 %v269
    %v309 = vunpack.c.l.b16 %v270
    %v310 = vunpack.c.l.b16 %v271
    %v311 = vunpack.c.l.b16 %v272
    %v312 = vunpack.c.l.b16 %v273
    %v313 = vunpack.c.l.b16 %v274
    %v314 = vunpack.c.l.b16 %v275
    %v315 = vunpack.c.l.b16 %v276
    %v316 = vunpack.c.l.b16 %v277
    %v317 = vpack.c.b16 %v302, %v301
    %v318 = vpack.c.b16 %v304, %v303
    %v319 = vpack.c.b16 %v306, %v305
    %v320 = vpack.c.b16 %v308, %v307
    %v321 = vpack.c.b16 %v310, %v309
    %v322 = vpack.c.b16 %v312, %v311
    %v323 = vpack.c.b16 %v314, %v313
    %v324 = vpack.c.b16 %v316, %v315
    %333 = vmatprep.subr.bf16.mxu0 0
    %334 = vmatpush1.bf16.msra.mxu0 %v317
    %335 = vmatprep.subr.bf16.mxu0 0
    %336 = vmatpush1.bf16.msra.mxu0 %v318
    %337 = vmatprep.subr.bf16.mxu0 0
    %338 = vmatpush1.bf16.msra.mxu0 %v319
    %339 = vmatprep.subr.bf16.mxu0 0
    %340 = vmatpush1.bf16.msra.mxu0 %v320
    %341 = vmatprep.subr.bf16.mxu0 0
    %342 = vmatpush1.bf16.msra.mxu0 %v321
    %343 = vmatprep.subr.bf16.mxu0 0
    %344 = vmatpush1.bf16.msra.mxu0 %v322
    %345 = vmatprep.subr.bf16.mxu0 0
    %346 = vmatpush1.bf16.msra.mxu0 %v323
    %347 = vmatprep.subr.bf16.mxu0 0
    %348 = vmatpush1.bf16.msra.mxu0 %v324
    %349 = vmatprep.subr.bf16.mxu0 0
    %350 = vmatpush1.bf16.msra.mxu0 0
    %351 = vmatprep.subr.bf16.mxu0 0
    %352 = vmatpush1.bf16.msra.mxu0 0
    %353 = vmatprep.subr.bf16.mxu0 0
    %354 = vmatpush1.bf16.msra.mxu0 0
    %355 = vmatprep.subr.bf16.mxu0 0
    %356 = vmatpush1.bf16.msra.mxu0 0
    %357 = vmatprep.subr.bf16.mxu0 0
    %358 = vmatpush1.bf16.msra.mxu0 0
    %359 = vmatprep.subr.bf16.mxu0 0
    %360 = vmatpush1.bf16.msra.mxu0 0
    %361 = vmatprep.subr.bf16.mxu0 0
    %362 = vmatpush1.bf16.msra.mxu0 0
    %363 = vmatprep.subr.bf16.mxu0 0
    %364 = vmatpush1.bf16.msra.mxu0 0
    %365 = vmatprep.mubr.bf16.mxu0 0
    %366 = vmatmul.mubr.bf16.gmra.mrb[0].mxu0 %v261
    %v367 = vpop.f32.mrb[0].mxu0
    %v368 = vadd.f32 %v283, %v367
    %v369 = vpop.f32.mrb[0].mxu0
    %v370 = vpop.f32.mrb[0].mxu0
    %v371 = vadd.f32 %v283, %v370
    %v372 = vpop.f32.mrb[0].mxu0
    %373 = vdwg.mxu0
    %v374 = vmax.f32 %v368, 0.0
    %v375 = vmax.f32 %v371, 0.0
    %v376 = vpack.c.bf16 %v375, %v374
    %v377 = vld [vmem:[%s9] sm:$0xf]
    %v378 = vld [vmem:[%s10] sm:$0x1]
    %v380 = vlaneseq
    %v381 = vshrl.u32 %v380, 7
    %v382 = vsub.s32 0, %v381
    %v383 = vrot.slane %v378, %v382
    %v386 = vsel %vm201, %v376, 0
    %v389 = vsel %vm79, %v377, 0
    %391 = vmatprep.subr.bf16.mxu0 0
    %392 = vmatpush1.bf16.msra.mxu0 %v389
    %393 = vmatprep.subr.bf16.mxu0 0
    %394 = vmatpush1.bf16.msra.mxu0 0
    %395 = vmatprep.subr.bf16.mxu0 0
    %396 = vmatpush1.bf16.msra.mxu0 0
    %397 = vmatprep.subr.bf16.mxu0 0
    %398 = vmatpush1.bf16.msra.mxu0 0
    %399 = vmatprep.subr.bf16.mxu0 0
    %400 = vmatpush1.bf16.msra.mxu0 0
    %401 = vmatprep.subr.bf16.mxu0 0
    %402 = vmatpush1.bf16.msra.mxu0 0
    %403 = vmatprep.subr.bf16.mxu0 0
    %404 = vmatpush1.bf16.msra.mxu0 0
    %405 = vmatprep.subr.bf16.mxu0 0
    %406 = vmatpush1.bf16.msra.mxu0 0
    %407 = vmatprep.subr.bf16.mxu0 0
    %408 = vmatpush1.bf16.msra.mxu0 0
    %409 = vmatprep.subr.bf16.mxu0 0
    %410 = vmatpush1.bf16.msra.mxu0 0
    %411 = vmatprep.subr.bf16.mxu0 0
    %412 = vmatpush1.bf16.msra.mxu0 0
    %413 = vmatprep.subr.bf16.mxu0 0
    %414 = vmatpush1.bf16.msra.mxu0 0
    %415 = vmatprep.subr.bf16.mxu0 0
    %416 = vmatpush1.bf16.msra.mxu0 0
    %417 = vmatprep.subr.bf16.mxu0 0
    %418 = vmatpush1.bf16.msra.mxu0 0
    %419 = vmatprep.subr.bf16.mxu0 0
    %420 = vmatpush1.bf16.msra.mxu0 0
    %421 = vmatprep.subr.bf16.mxu0 0
    %422 = vmatpush1.bf16.msra.mxu0 0
    %423 = vmatprep.mubr.bf16.mxu0 0
    %424 = vmatmul.mubr.bf16.gmra.mrb[0].mxu0 %v386
    %v425 = vpop.f32.mrb[0].mxu0
    %v426 = vadd.f32 %v383, %v425
    %v427 = vpop.f32.mrb[0].mxu0
    %v428 = vpop.f32.mrb[0].mxu0
    %v429 = vadd.f32 %v383, %v428
    %v430 = vpop.f32.mrb[0].mxu0
    %431 = vdwg.mxu0
    %v432 = vmax.f32 %v426, 0.0
    %v433 = vmax.f32 %v429, 0.0
    %v434 = vpack.c.bf16 %v433, %v432
    %v435 = vld [vmem:[%s11] sm:$0xf]
    %v436 = vld [vmem:[%s11 + $0x4] sm:$0x3]
    %v437 = vld [vmem:[%s12] sm:$0x1]
    %v439 = vlaneseq
    %v440 = vshrl.u32 %v439, 7
    %v441 = vsub.s32 0, %v440
    %v442 = vrot.slane %v437, %v441
    %v446 = vunpack.c.l.b16 %v435
    %v447 = vunpack.c.l.b16 %v436
    %v448 = vpack.c.b16 %v447, %v446
    %v450 = vsel %vm141, %v434, 0
    %v453 = vsel %vm145, %v448, 0
    %455 = vmatprep.subr.bf16.mxu0 0
    %456 = vmatpush1.bf16.msra.mxu0 %v453
    %457 = vmatprep.subr.bf16.mxu0 0
    %458 = vmatpush1.bf16.msra.mxu0 0
    %459 = vmatprep.subr.bf16.mxu0 0
    %460 = vmatpush1.bf16.msra.mxu0 0
    %461 = vmatprep.subr.bf16.mxu0 0
    %462 = vmatpush1.bf16.msra.mxu0 0
    %463 = vmatprep.subr.bf16.mxu0 0
    %464 = vmatpush1.bf16.msra.mxu0 0
    %465 = vmatprep.subr.bf16.mxu0 0
    %466 = vmatpush1.bf16.msra.mxu0 0
    %467 = vmatprep.subr.bf16.mxu0 0
    %468 = vmatpush1.bf16.msra.mxu0 0
    %469 = vmatprep.subr.bf16.mxu0 0
    %470 = vmatpush1.bf16.msra.mxu0 0
    %471 = vmatprep.subr.bf16.mxu0 0
    %472 = vmatpush1.bf16.msra.mxu0 0
    %473 = vmatprep.subr.bf16.mxu0 0
    %474 = vmatpush1.bf16.msra.mxu0 0
    %475 = vmatprep.subr.bf16.mxu0 0
    %476 = vmatpush1.bf16.msra.mxu0 0
    %477 = vmatprep.subr.bf16.mxu0 0
    %478 = vmatpush1.bf16.msra.mxu0 0
    %479 = vmatprep.subr.bf16.mxu0 0
    %480 = vmatpush1.bf16.msra.mxu0 0
    %481 = vmatprep.subr.bf16.mxu0 0
    %482 = vmatpush1.bf16.msra.mxu0 0
    %483 = vmatprep.subr.bf16.mxu0 0
    %484 = vmatpush1.bf16.msra.mxu0 0
    %485 = vmatprep.subr.bf16.mxu0 0
    %486 = vmatpush1.bf16.msra.mxu0 0
    %487 = vmatprep.mubr.bf16.mxu0 0
    %488 = vmatmul.mubr.bf16.gmra.mrb[0].mxu0 %v450
    %v489 = vpop.f32.mrb[0].mxu0
    %v490 = vadd.f32 %v442, %v489
    %v491 = vpop.f32.mrb[0].mxu0
    %v492 = vpop.f32.mrb[0].mxu0
    %v493 = vadd.f32 %v442, %v492
    %v494 = vpop.f32.mrb[0].mxu0
    %495 = vdwg.mxu0
    %496 = vst [vmem:[#allocation2] sm:$0xff] %v490
    %497 = vst [vmem:[#allocation2 + $0x8] sm:$0xff] %v493
    %498 = vst [vmem:[#allocation4] sm:$0xff] %v259
    %499 = vst [vmem:[#allocation4 + $0x8] sm:$0xff] %v260
    // Predicated region
    $region54: #{tpu_custom_call.1} parent=1 // pred_check
      _
    $region55: #{tpu_custom_call.1} parent=1 // pred_check_branch
      %501 = sbr.rel (0) target = $region57
    $region56: #{tpu_custom_call.1} parent=1 // pred_region
      %s503 = ssub.s32 256, 256
      %504 = vsyncadd [#allocation3], %s503
      %s505 = sshll.u32 [#allocation2], 4
      %s506 = int_to_ptr.vmem [resolvable:$true] %s505
      %511 = dma.vmem_to_hbm [thread:$0]  %s506, 256, %s13, [#allocation3], 128, 128, 8
    $region57: #{tpu_custom_call.1} parent=1 // pred_fallthru
      _
    // Predicated region
    $region58: #{tpu_custom_call.1} parent=1 // pred_check
      _
    $region59: #{tpu_custom_call.1} parent=1 // pred_check_branch
      %513 = sbr.rel (0) target = $region61
    $region60: #{tpu_custom_call.1} parent=1 // pred_region
      %s515 = ssub.s32 256, 256
      %516 = vsyncadd [#allocation5], %s515
      %s517 = sshll.u32 [#allocation4], 4
      %s518 = int_to_ptr.vmem [resolvable:$true] %s517
      %523 = dma.vmem_to_hbm [thread:$0]  %s518, 256, %s14, [#allocation5], 128, 128, 8
    $region61: #{tpu_custom_call.1} parent=1 // pred_fallthru
      _
    // Predicated region
    $region62: #{tpu_custom_call.1} parent=1 // pred_check
      _
    $region63: #{tpu_custom_call.1} parent=1 // pred_check_branch
      %525 = sbr.rel (0) target = $region65
    $region64: #{tpu_custom_call.1} parent=1 // pred_region
      %526 = dma.done [#allocation3], 256
    $region65: #{tpu_custom_call.1} parent=1 // pred_fallthru
      _
    // Predicated region
    $region66: #{tpu_custom_call.1} parent=1 // pred_check
      _
    $region67: #{tpu_custom_call.1} parent=1 // pred_check_branch
      %528 = sbr.rel (0) target = $region69
    $region68: #{tpu_custom_call.1} parent=1 // pred_region
      %529 = dma.done [#allocation5], 256
    $region69: #{tpu_custom_call.1} parent=1 // pred_fallthru
      _
    %530 = vsyncpa [#allocation3], 1
    %531 = vsyncpa [#allocation5], 1

</llo_original>
